<compile_context>
chip_gen: v5e
topology: v5e:2x2
jax: 0.10.0
libtpu: 0.0.40
codegen_flags: <defaults>
</compile_context>

<pallas_src>
import jax
import jax.numpy as jnp
from jax.experimental import pallas as pl
from jax.experimental.pallas import tpu as pltpu

_EPS = 1e-06
_LANES = 128
_GROUP = 32                               # sublane group (multiple of f32/bf16/int8 min tile)
_TARGET_BLOCK_BYTES = 4 * 1024 * 1024     # per input per pipeline buffer (f32-equivalent)
_VMEM_LIMIT_BYTES = 40 * 1024 * 1024      # explicit: v5e's default scoped limit is only 16 MiB
_NUM_CORE_SPLIT = 2                       # v7x has 2 TensorCores per chip
_MIN_BLOCKS_FOR_SPLIT = 4 * _NUM_CORE_SPLIT
_MAX_LANE_DIM = 4096
_MIN_LANE_DIM = 64


def _pick_lane_dim(n: int):
    """Best divisor of n to use as the lane (last) dim, or None (pad fallback)."""
    if n % _LANES == 0:
        return _LANES
    best, best_util = None, 0.0
    for d in range(_MIN_LANE_DIM, min(_MAX_LANE_DIM, n) + 1):
        if n % d:
            continue
        util = d / (pl.cdiv(d, _LANES) * _LANES)
        if util >= best_util:            # ties -> prefer the larger d
            best, best_util = d, util
    return best


def _as_stream_dtype(x, lane_dim):
    """Dtype the kernel streams from HBM (converted to f32 on the VPU in-kernel)."""
    dt = x.dtype
    if dt == jnp.float32 or dt == jnp.bfloat16:
        return x                          # stream natively
    if (dt == jnp.bool_ or dt == jnp.int8) and lane_dim == _LANES:
        # Hard-labelled masks: 1 B/elem streaming (5 B/elem total HBM traffic
        # instead of 8) -- the only wrapper pass is a cheap 1B->1B convert.
        return x.astype(jnp.int8)
    return x.astype(jnp.float32)


def _make_dice_kernel(*, grouped, needs_row_mask, needs_block_guard,
                      bpc, tile, total, num_blocks):
    def kernel(p_ref, t_ref, inter_ref, union_ref):
        i = pl.program_id(1)
        blk = pl.program_id(0) * bpc + i          # logical (unclamped) block index

        @pl.when(i == 0)
        def _init():
            inter_ref[...] = jnp.zeros_like(inter_ref)
            union_ref[...] = jnp.zeros_like(union_ref)

        def _accumulate():
            p = p_ref[...].astype(jnp.float32)
            t = t_ref[...].astype(jnp.float32)

            if needs_row_mask:
                # Partial last block: mask rows past the true row count.
                # 2-D sublane iota -> VPU compare/select, hidden under DMA.
                ids = jax.lax.broadcasted_iota(jnp.int32, (tile, 1), 0)
                valid = (blk * tile + ids) < total
                p = jnp.where(valid, p, 0.0)
                t = jnp.where(valid, t, 0.0)

            inter_blk = p * t
            union_blk = p + t                     # sum(p) + sum(t) fused
            if grouped:
                # (g_tile, 32, d) block -> (32, d) resident partial: VPU adds only.
                inter_ref[...] += jnp.sum(inter_blk, axis=0)
                union_ref[...] += jnp.sum(union_blk, axis=0)
            else:
                inter_ref[...] += jnp.sum(inter_blk, axis=0, keepdims=True)
                union_ref[...] += jnp.sum(union_blk, axis=0, keepdims=True)

        if needs_block_guard:
            # Odd block count split across cores: the trailing logical block is
            # a clamped duplicate DMA -- skip its contribution.
            pl.when(blk < num_blocks)(_accumulate)
        else:
            _accumulate()

    return kernel


@jax.jit
def dice_loss(y_pred_logits, y_true):
    p = jnp.ravel(y_pred_logits)
    t = jnp.ravel(y_true)
    n = p.shape[0]
    if t.shape[0] != n:
        raise ValueError("y_pred_logits and y_true must have the same number of elements")
    if n == 0:
        return jnp.asarray(1.0, jnp.float32)      # union == 0 -> DSC == 0 -> loss == 1

    d = _pick_lane_dim(n)
    if d is None:
        # Pathological sizes (no usable divisor of n): small zero-pad fallback.
        # TODO(synk): zero-copy handling here would need 1-D blocks / manual DMA.
        pad = (-n) % _LANES
        p = jnp.pad(p, (0, pad))
        t = jnp.pad(t, (0, pad))
        d = _LANES
    rows = p.shape[0] // d

    p = _as_stream_dtype(p, d)
    t = _as_stream_dtype(t, d)

    lane_pad = pl.cdiv(d, _LANES) * _LANES        # lanes after VMEM tiling

    # ---- choose the block layout (all static, trace-time Python) ------------
    grouped = (rows % _GROUP == 0)
    if grouped:
        groups = rows // _GROUP
        group_bytes = _GROUP * lane_pad * 4
        g_cap = max(1, min(groups, _TARGET_BLOCK_BYTES // group_bytes))
        # Largest divisor of `groups` within the budget -> blocks tile exactly,
        # so the grouped path never needs in-kernel row masking.
        g_tile = max(c for c in range(1, g_cap + 1) if groups % c == 0)
        if g_tile * 8 < g_cap:                    # degenerate exact tiling -> flat path
            grouped = False

    if grouped:
        tile = g_tile
        total = groups
        block = (tile, _GROUP, d)
        acc_rows = _GROUP
        p2 = p.reshape(groups, _GROUP, d)         # free bitcast reshapes
        t2 = t.reshape(groups, _GROUP, d)
        needs_row_mask = False
    else:
        row_bytes = lane_pad * 4
        tile = _TARGET_BLOCK_BYTES // row_bytes   # ~4 MiB blocks (8192 rows @ d=128)
        tile = max(_GROUP, (tile // _GROUP) * _GROUP)
        tile = min(rows, tile)
        total = rows
        block = (tile, d)
        acc_rows = 1
        p2 = p.reshape(rows, d)
        t2 = t.reshape(rows, d)
        needs_row_mask = (rows % tile != 0)

    num_blocks = pl.cdiv(total, tile)
    # Split across the 2 v7x TensorCores only when there is enough work that a
    # possible duplicated remainder block is negligible on 1-core v5e/v6e.
    ncs = _NUM_CORE_SPLIT if num_blocks >= _MIN_BLOCKS_FOR_SPLIT else 1
    bpc = pl.cdiv(num_blocks, ncs)                # blocks per core
    needs_block_guard = (num_blocks != ncs * bpc)

    if needs_block_guard:
        def _blk(c, i):
            return jnp.minimum(c * bpc + i, num_blocks - 1)   # never request OOB blocks
    else:
        def _blk(c, i):
            return c * bpc + i

    if grouped:
        in_index_map = lambda c, i: (_blk(c, i), 0, 0)
    else:
        in_index_map = lambda c, i: (_blk(c, i), 0)

    kernel = _make_dice_kernel(
        grouped=grouped, needs_row_mask=needs_row_mask,
        needs_block_guard=needs_block_guard, bpc=bpc, tile=tile,
        total=total, num_blocks=num_blocks)

    out_bytes = 2 * ncs * acc_rows * d * 4
    cost = pl.CostEstimate(
        flops=5 * n,
        transcendentals=0,
        bytes_accessed=p2.size * p2.dtype.itemsize + t2.size * t2.dtype.itemsize + out_bytes,
    )

    inter_part, union_part = pl.pallas_call(
        kernel,
        out_shape=(
            jax.ShapeDtypeStruct((ncs * acc_rows, d), jnp.float32),
            jax.ShapeDtypeStruct((ncs * acc_rows, d), jnp.float32),
        ),
        grid_spec=pltpu.PrefetchScalarGridSpec(
            num_scalar_prefetch=0,
            grid=(ncs, bpc),
            in_specs=[
                pl.BlockSpec(block, in_index_map),
                pl.BlockSpec(block, in_index_map),
            ],
            out_specs=[
                pl.BlockSpec((acc_rows, d), lambda c, i: (c, 0)),
                pl.BlockSpec((acc_rows, d), lambda c, i: (c, 0)),
            ],
        ),
        compiler_params=pltpu.CompilerParams(
            dimension_semantics=("parallel", "arbitrary"),
            vmem_limit_bytes=_VMEM_LIMIT_BYTES,
        ),
        cost_estimate=cost,
    )(p2, t2)

    # Tiny epilogue (one small XLA fusion over the per-core / per-lane partials).
    intersection = jnp.sum(inter_part)
    union = jnp.sum(union_part)
    dsc = 2.0 * (intersection / (union + _EPS))
    return 1.0 - dsc


def _reference(y_pred_logits, y_true):
    p = jnp.ravel(y_pred_logits).astype(jnp.float32)
    t = jnp.ravel(y_true).astype(jnp.float32)
    intersection = jnp.sum(p * t)
    union = jnp.sum(p) + jnp.sum(t)
    dsc = 2.0 * (intersection / (union + _EPS))
    return 1.0 - dsc


if __name__ == "__main__":
    key = jax.random.PRNGKey(0)
    k1, k2, k3, k4, k5, k6, k7, k8 = jax.random.split(key, 8)

    # 1) Segmentation-style inputs (n % 128 == 0): batch=2, channels=4, 16x16.
    y_pred = jax.random.normal(k1, (2, 4, 16, 16), dtype=jnp.float32)
    y_true = (jax.random.uniform(k2, (2, 4, 16, 16)) > 0.5).astype(jnp.float32)
    loss = dice_loss(y_pred, y_true)
    jax.block_until_ready(loss)
    ref = _reference(y_pred, y_true)
    assert jnp.allclose(loss, ref, rtol=1e-5, atol=1e-5), (loss, ref)

    # 2) Ragged spatial shape (n % 128 != 0): divisor-based lane view, no pad copy.
    y_pred_r = jax.random.normal(k3, (2, 4, 181, 191), dtype=jnp.float32)
    y_true_r = (jax.random.uniform(k4, (2, 4, 181, 191)) > 0.5).astype(jnp.float32)
    loss_r = dice_loss(y_pred_r, y_true_r)
    jax.block_until_ready(loss_r)
    ref_r = _reference(y_pred_r, y_true_r)
    assert jnp.allclose(loss_r, ref_r, rtol=1e-5, atol=1e-5), (loss_r, ref_r)

    # 3) Larger ragged shape: multi-block flat path with in-kernel row masking
    #    of the partial last block (accumulation across grid steps).
    y_pred_m = jax.random.normal(k5, (8, 4, 181, 191), dtype=jnp.float32)
    y_true_m = (jax.random.uniform(k6, (8, 4, 181, 191)) > 0.5).astype(jnp.float32)
    loss_m = dice_loss(y_pred_m, y_true_m)
    jax.block_until_ready(loss_m)
    ref_m = _reference(y_pred_m, y_true_m)
    assert jnp.allclose(loss_m, ref_m, rtol=1e-5, atol=1e-5), (loss_m, ref_m)

    # 4) Hard-labelled boolean mask: native 1 B/elem int8 streaming and the
    #    grouped (groups, 32, 128) VPU-only accumulation path.
    y_pred_b = jax.random.normal(k7, (2, 4, 64, 128), dtype=jnp.float32)
    y_true_b = jax.random.uniform(k8, (2, 4, 64, 128)) > 0.5
    loss_b = dice_loss(y_pred_b, y_true_b)
    jax.block_until_ready(loss_b)
    ref_b = _reference(y_pred_b, y_true_b)
    assert jnp.allclose(loss_b, ref_b, rtol=1e-5, atol=1e-5), (loss_b, ref_b)

    print("KERNEL_OK")
</pallas_src>

<mosaic_0001>
module attributes {stable_mosaic.version = 11 : i64} {
  func.func @kernel(%arg0: i32, %arg1: i32, %arg2: memref<16x128xf32, #tpu.memory_space<vmem>>, %arg3: memref<16x128xf32, #tpu.memory_space<vmem>>, %arg4: memref<1x128xf32, #tpu.memory_space<vmem>>, %arg5: memref<1x128xf32, #tpu.memory_space<vmem>>) attributes {dimension_semantics = [#tpu.dimension_semantics<parallel>, #tpu.dimension_semantics<arbitrary>], iteration_bounds = array<i64: 1, 1>, scalar_prefetch = 0 : i64, scratch_operands = 0 : i64, tpu.core_type = #tpu.core_type<tc>, window_params = [{transform_indices = @transform_0, window_bounds = array<i64: 16, 128>}, {transform_indices = @transform_1, window_bounds = array<i64: 16, 128>}, {transform_indices = @transform_2, window_bounds = array<i64: 1, 128>}, {transform_indices = @transform_3, window_bounds = array<i64: 1, 128>}]} {
    %c0_i32 = arith.constant 0 : i32
    %0 = arith.cmpi eq, %arg1, %c0_i32 : i32
    %1 = arith.extui %0 : i1 to i32
    %c0_i32_0 = arith.constant 0 : i32
    %2 = arith.cmpi ne, %1, %c0_i32_0 : i32
    scf.if %2 {
      %cst_13 = arith.constant 0.000000e+00 : f32
      %17 = vector.broadcast %cst_13 : f32 to vector<1x128xf32>
      %c0_14 = arith.constant 0 : index
      %c0_15 = arith.constant 0 : index
      %18 = vector.load %arg4[%c0_14, %c0_15] : memref<1x128xf32, #tpu.memory_space<vmem>>, vector<1x128xf32>
      tpu.vector_store %arg4[%c0_14, %c0_15], %17 {strides = array<i32>} : memref<1x128xf32, #tpu.memory_space<vmem>>, vector<1x128xf32>,
      %cst_16 = arith.constant 0.000000e+00 : f32
      %19 = vector.broadcast %cst_16 : f32 to vector<1x128xf32>
      %c0_17 = arith.constant 0 : index
      %c0_18 = arith.constant 0 : index
      %20 = vector.load %arg5[%c0_17, %c0_18] : memref<1x128xf32, #tpu.memory_space<vmem>>, vector<1x128xf32>
      tpu.vector_store %arg5[%c0_17, %c0_18], %19 {strides = array<i32>} : memref<1x128xf32, #tpu.memory_space<vmem>>, vector<1x128xf32>,
    } else {
    }
    %c0 = arith.constant 0 : index
    %c0_1 = arith.constant 0 : index
    %3 = vector.load %arg2[%c0, %c0_1] : memref<16x128xf32, #tpu.memory_space<vmem>>, vector<16x128xf32>
    %c0_2 = arith.constant 0 : index
    %c0_3 = arith.constant 0 : index
    %4 = vector.load %arg3[%c0_2, %c0_3] : memref<16x128xf32, #tpu.memory_space<vmem>>, vector<16x128xf32>
    %5 = arith.mulf %3, %4 : vector<16x128xf32>
    %6 = arith.addf %3, %4 : vector<16x128xf32>
    %c0_4 = arith.constant 0 : index
    %c0_5 = arith.constant 0 : index
    %7 = vector.load %arg4[%c0_4, %c0_5] : memref<1x128xf32, #tpu.memory_space<vmem>>, vector<1x128xf32>
    %cst = arith.constant dense<0.000000e+00> : vector<128xf32>
    %8 = vector.multi_reduction <add>, %5, %cst [0] : vector<16x128xf32> to vector<128xf32>
    %9 = vector.shape_cast %8 : vector<128xf32> to vector<1x128xf32>
    %10 = arith.addf %7, %9 : vector<1x128xf32>
    %c0_6 = arith.constant 0 : index
    %c0_7 = arith.constant 0 : index
    %11 = vector.load %arg4[%c0_6, %c0_7] : memref<1x128xf32, #tpu.memory_space<vmem>>, vector<1x128xf32>
    tpu.vector_store %arg4[%c0_6, %c0_7], %10 {strides = array<i32>} : memref<1x128xf32, #tpu.memory_space<vmem>>, vector<1x128xf32>,
    %c0_8 = arith.constant 0 : index
    %c0_9 = arith.constant 0 : index
    %12 = vector.load %arg5[%c0_8, %c0_9] : memref<1x128xf32, #tpu.memory_space<vmem>>, vector<1x128xf32>
    %cst_10 = arith.constant dense<0.000000e+00> : vector<128xf32>
    %13 = vector.multi_reduction <add>, %6, %cst_10 [0] : vector<16x128xf32> to vector<128xf32>
    %14 = vector.shape_cast %13 : vector<128xf32> to vector<1x128xf32>
    %15 = arith.addf %12, %14 : vector<1x128xf32>
    %c0_11 = arith.constant 0 : index
    %c0_12 = arith.constant 0 : index
    %16 = vector.load %arg5[%c0_11, %c0_12] : memref<1x128xf32, #tpu.memory_space<vmem>>, vector<1x128xf32>
    tpu.vector_store %arg5[%c0_11, %c0_12], %15 {strides = array<i32>} : memref<1x128xf32, #tpu.memory_space<vmem>>, vector<1x128xf32>,
    return
  }
  func.func @transform_0(%arg0: i32, %arg1: i32) -> (i32, i32) {
    %c1_i32 = arith.constant 1 : i32
    %0 = arith.muli %arg0, %c1_i32 : i32
    %1 = arith.addi %0, %arg1 : i32
    %c0_i32 = arith.constant 0 : i32
    %c0_i32_0 = arith.constant 0 : i32
    return %1, %c0_i32 : i32, i32
  }
  func.func @transform_1(%arg0: i32, %arg1: i32) -> (i32, i32) {
    %c1_i32 = arith.constant 1 : i32
    %0 = arith.muli %arg0, %c1_i32 : i32
    %1 = arith.addi %0, %arg1 : i32
    %c0_i32 = arith.constant 0 : i32
    %c0_i32_0 = arith.constant 0 : i32
    return %1, %c0_i32 : i32, i32
  }
  func.func @transform_2(%arg0: i32, %arg1: i32) -> (i32, i32) {
    %c0_i32 = arith.constant 0 : i32
    %c0_i32_0 = arith.constant 0 : i32
    return %arg0, %c0_i32 : i32, i32
  }
  func.func @transform_3(%arg0: i32, %arg1: i32) -> (i32, i32) {
    %c0_i32 = arith.constant 0 : i32
    %c0_i32_0 = arith.constant 0 : i32
    return %arg0, %c0_i32 : i32, i32
  }
}

</mosaic_0001>

<llo_original>
// kernel: dice_loss.1
$region0: #{dice_loss.1}
  #allocation0 [shape = 'u32[]', space=smem, size = 0x4, offset = 0x4, fixed_abs, tag = 'smem constant byte address 0x4 - core index']
  #allocation1 [shape = 'u32[72,128]{1,0:T(1,128)}', space=vmem, size = 0x9000, scoped, tag = 'internal scratch']
  %s0 = inlined_call_operand.vmem [shape: f32[16,128], index: 0, kind: input, shape index: {}]
  %s1 = inlined_call_operand.vmem [shape: f32[16,128], index: 1, kind: input, shape index: {}]
  %s2 = inlined_call_operand.vmem [shape: f32[1,128], index: 2, kind: output, shape index: {0}]
  %s3 = inlined_call_operand.vmem [shape: f32[1,128], index: 3, kind: output, shape index: {1}]
  %4 = xla_tuple %s2, %s3
  %s5 = sld [smem:[#allocation0]]
  $region30: #{dice_loss.1} parent=0
    _
  %s7 = ssub.s32 1, %s5
  %s8 = scalar_select 0, %s7, %s5
  // Predicated region
  $region2: #{dice_loss.1} parent=0 // pred_check
    _
  $region3: #{dice_loss.1} parent=0 // pred_check_branch
    %10 = sbr.rel (0) target = $region5
  $region4: #{dice_loss.1} parent=0 // pred_region
    %s11 = sadd.s32 0, 0
    %s12 = smul.u32 2, %s11
    %p13 = scmp.lt.s32.totalorder %s12, 1
    %s14 = scalar_select %p13, %s12, 1
    %s15 = smul.addr %s14, 8
    %s16 = scalar_lea.vmem %s0, %s15
    %s17 = sadd.s32 0, 0
    %s18 = smul.u32 2, %s17
  $region5: #{dice_loss.1} parent=0 // pred_fallthru
    _
  // Predicated region
  $region6: #{dice_loss.1} parent=0 // pred_check
    _
  $region7: #{dice_loss.1} parent=0 // pred_check_branch
    %20 = sbr.rel (0) target = $region9
  $region8: #{dice_loss.1} parent=0 // pred_region
    %s21 = sadd.s32 0, 0
    %s22 = smul.u32 2, %s21
    %p23 = scmp.lt.s32.totalorder %s22, 1
    %s24 = scalar_select %p23, %s22, 1
    %s25 = smul.addr %s24, 8
    %s26 = scalar_lea.vmem %s1, %s25
    %s27 = sadd.s32 0, 0
    %s28 = smul.u32 2, %s27
  $region9: #{dice_loss.1} parent=0 // pred_fallthru
    _
  %s29 = sadd.s32 0, 0
  %s30 = smul.u32 2, %s29
  %p31 = scmp.lt.s32.totalorder %s30, 1
  %s32 = scalar_select %p31, %s30, 1
  %s33 = smul.addr %s32, 8
  %s34 = scalar_lea.vmem %s0, %s33
  %s35 = sadd.s32 0, 0
  %s36 = smul.u32 2, %s35
  %p37 = scmp.lt.s32.totalorder %s36, 1
  %s38 = scalar_select %p37, %s36, 1
  %s39 = smul.addr %s38, 8
  %s40 = scalar_lea.vmem %s1, %s39
  %s41 = sadd.s32 0, 0
  %s42 = smul.u32 2, %s41
  %p43 = scmp.lt.s32.totalorder %s42, 1
  %s44 = scalar_select %p43, %s42, 1
  %s45 = smul.addr %s44, 8
  %s46 = scalar_lea.vmem %s0, %s45
  %s47 = sadd.s32 0, 0
  %s48 = smul.u32 2, %s47
  %s49 = sadd.s32 0, 0
  %s50 = smul.u32 2, %s49
  %p51 = scmp.lt.s32.totalorder %s50, 1
  %s52 = scalar_select %p51, %s50, 1
  %s53 = smul.addr %s52, 8
  %s54 = scalar_lea.vmem %s1, %s53
  %s55 = sadd.s32 0, 0
  %s56 = smul.u32 2, %s55
  %p57 = scmp.eq.s32.totalorder 0, 0
  // Predicated region
  $region10: #{dice_loss.1} parent=0 // pred_check
    %p58 = pneg %p57
  $region11: #{dice_loss.1} parent=0 // pred_check_branch
    %60 = sbr.rel (%p58) target = $region13
  $region12: #{dice_loss.1} parent=0 // pred_region
    %61 = vst [vmem:[%s2] sm:$0x1] 0.0
    %62 = vst [vmem:[%s3] sm:$0x1] 0.0
  $region13: #{dice_loss.1} parent=0 // pred_fallthru
    _
  %v63 = vld [vmem:[%s46] sm:$0xff]
  %v64 = vld [vmem:[%s46 + $0x8] sm:$0xff]
  %v65 = vld [vmem:[%s54] sm:$0xff]
  %v66 = vld [vmem:[%s54 + $0x8] sm:$0xff]
  %v67 = vmul.f32 %v63, %v65
  %v68 = vmul.f32 %v64, %v66
  %v69 = vadd.f32 %v63, %v65
  %v70 = vadd.f32 %v64, %v66
  %v71 = vld [vmem:[%s2] sm:$0x1]
  %v72 = vadd.f32 %v67, %v68
  %v73 = vrot.slane %v72, 4
  %v74 = vadd.f32 %v72, %v73
  %v75 = vrot.slane %v74, 2
  %v76 = vadd.f32 %v74, %v75
  %v77 = vrot.slane %v76, 1
  %v78 = vadd.f32 %v76, %v77
  %v79 = vadd.f32 %v71, %v78
  %80 = vst [vmem:[%s2] sm:$0x1] %v79
  %v81 = vld [vmem:[%s3] sm:$0x1]
  %v82 = vadd.f32 %v69, %v70
  %v83 = vrot.slane %v82, 4
  %v84 = vadd.f32 %v82, %v83
  %v85 = vrot.slane %v84, 2
  %v86 = vadd.f32 %v84, %v85
  %v87 = vrot.slane %v86, 1
  %v88 = vadd.f32 %v86, %v87
  %v89 = vadd.f32 %v81, %v88
  %90 = vst [vmem:[%s3] sm:$0x1] %v89
  // Predicated region
  $region14: #{dice_loss.1} parent=0 // pred_check
    _
  $region15: #{dice_loss.1} parent=0 // pred_check_branch
    %92 = sbr.rel (0) target = $region17
  $region16: #{dice_loss.1} parent=0 // pred_region
    _
  $region17: #{dice_loss.1} parent=0 // pred_fallthru
    _
  // Predicated region
  $region18: #{dice_loss.1} parent=0 // pred_check
    _
  $region19: #{dice_loss.1} parent=0 // pred_check_branch
    %94 = sbr.rel (0) target = $region21
  $region20: #{dice_loss.1} parent=0 // pred_region
    _
  $region21: #{dice_loss.1} parent=0 // pred_fallthru
    _
  // Predicated region
  $region22: #{dice_loss.1} parent=0 // pred_check
    _
  $region23: #{dice_loss.1} parent=0 // pred_check_branch
    %96 = sbr.rel (0) target = $region25
  $region24: #{dice_loss.1} parent=0 // pred_region
    _
  $region25: #{dice_loss.1} parent=0 // pred_fallthru
    _
  // Predicated region
  $region26: #{dice_loss.1} parent=0 // pred_check
    _
  $region27: #{dice_loss.1} parent=0 // pred_check_branch
    %98 = sbr.rel (0) target = $region29
  $region28: #{dice_loss.1} parent=0 // pred_region
    _
  $region29: #{dice_loss.1} parent=0 // pred_fallthru
    _

</llo_original>
